<compile_context>
chip_gen: v5e
topology: v5e:2x2
jax: 0.10.0
libtpu: 0.0.40
codegen_flags: <defaults>
</compile_context>

<pallas_src>
import functools

import jax
import jax.numpy as jnp
from jax.experimental import pallas as pl
from jax.experimental.pallas import tpu as pltpu


def _ce_lovasz_kernel(x_ref, lbl_ref, err_ref, ce_ref, cnt_ref, *,
                      ignore_lb, hw, tile, num_tg):
    g = pl.program_id(1)
    t = pl.program_id(2)

    @pl.when(t == 0)
    def _():
        ce_ref[...] = jnp.zeros_like(ce_ref)
        cnt_ref[...] = jnp.zeros_like(cnt_ref)

    x = x_ref[0]                       # (C, T) float32 logits
    lbl = lbl_ref[0]                   # (1, T) int32 labels
    C, T = x.shape

    # Ragged-edge mask: lanes past HW in the last tile carry unspecified data.
    col0 = (g * num_tg + t) * tile                                   # scalar
    lane = jax.lax.broadcasted_iota(jnp.int32, (1, T), 1)            # (1, T)
    in_bounds = (col0 + lane) < hw                                   # (1, T)

    ch = jax.lax.broadcasted_iota(jnp.int32, (C, T), 0)              # channel ids
    one_hot = (ch == lbl) & in_bounds                                # (C, T); 255 -> all False
    x_m = jnp.where(in_bounds, x, 0.0)                               # zero OOB lanes

    # ---- Lovasz per-class errors on the *raw* logits (matches the PyTorch code,
    #      which never applies softmax and never excludes ignore pixels).
    err_ref[...] = jnp.abs(one_hot.astype(jnp.float32) - x_m)

    # ---- CrossEntropy: logsumexp over C minus the target logit, ignore-masked.
    valid = (lbl != ignore_lb) & in_bounds                                 # (1, T)
    m = jnp.max(x_m, axis=0, keepdims=True)                                # (1, T)
    lse = m + jnp.log(jnp.sum(jnp.exp(x_m - m), axis=0, keepdims=True))    # (1, T)
    x_tgt = jnp.sum(jnp.where(one_hot, x_m, 0.0), axis=0, keepdims=True)   # (1, T)
    nll = jnp.where(valid, lse - x_tgt, 0.0)                               # (1, T)

    # Vector accumulation only (VALU); the cross-lane reduce happens once in JAX.
    ce_ref[0] += nll
    cnt_ref[0] += valid.astype(jnp.float32)


def _pick_tiling(HW, C, max_block_bytes=4 * 1024 * 1024):
    """Lane tiling: tile (mult of 128), tile count, and v7x parallel split G."""
    # Per lane column (f32/int32): inputs (logits C*4 + label 4) and err output
    # (C*4), each double-buffered, plus the resident ce/cnt accumulators.
    per_col = 2 * (C * 4 + 4) + 2 * (C * 4) + 8
    tile_max = max(128, (max_block_bytes // per_col) // 128 * 128)
    num_t = pl.cdiv(HW, tile_max)
    if num_t >= 2 and num_t % 2:
        num_t += 1                       # prefer an even tile count (v7x 2-TC split)
    tile = pl.cdiv(pl.cdiv(HW, num_t), 128) * 128   # pad <= one 128-lane sliver
    num_t = pl.cdiv(HW, tile)
    G = 2 if (num_t >= 2 and num_t % 2 == 0) else 1
    return int(tile), int(num_t), int(G)


def lovasz_ce_loss_pallas(logits, label, *, ce_weight=0.0, lovasz_weight=0.0,
                          ignore_lb=255):
    """logits: (N, C, H, W) float, label: (N, H, W) int. Returns the scalar loss."""
    N, C, H, W = logits.shape
    HW = H * W
    tile, num_t, G = _pick_tiling(HW, C)
    num_tg = num_t // G
    HW_pad = num_t * tile

    # Pure reshapes / dtype no-ops (no HBM copy of the logits before the kernel).
    x = logits.reshape(N, C, HW).astype(jnp.float32)
    lbl = label.reshape(N, 1, HW).astype(jnp.int32)

    kernel = functools.partial(_ce_lovasz_kernel, ignore_lb=int(ignore_lb),
                               hw=HW, tile=tile, num_tg=num_tg)

    cost = pl.CostEstimate(
        flops=N * HW_pad * (10 * C + 12),
        transcendentals=N * HW_pad * (C + 1),
        bytes_accessed=4 * (x.size + lbl.size + C * N * HW_pad + 2 * N * G * tile),
    )

    err, ce_part, cnt_part = pl.pallas_call(
        kernel,
        out_shape=(
            jax.ShapeDtypeStruct((C, N * HW_pad), jnp.float32),   # Lovasz-tail layout
            jax.ShapeDtypeStruct((N * G, 1, tile), jnp.float32),  # CE partials
            jax.ShapeDtypeStruct((N * G, 1, tile), jnp.float32),  # valid-pixel counts
        ),
        grid_spec=pltpu.PrefetchScalarGridSpec(
            num_scalar_prefetch=0,
            grid=(N, G, num_tg),
            in_specs=[
                pl.BlockSpec((1, C, tile), lambda n, g, t: (n, 0, g * num_tg + t)),
                pl.BlockSpec((1, 1, tile), lambda n, g, t: (n, 0, g * num_tg + t)),
            ],
            out_specs=[
                pl.BlockSpec((C, tile),
                             lambda n, g, t: (0, n * num_t + g * num_tg + t)),
                pl.BlockSpec((1, 1, tile), lambda n, g, t: (n * G + g, 0, 0)),
                pl.BlockSpec((1, 1, tile), lambda n, g, t: (n * G + g, 0, 0)),
            ],
        ),
        compiler_params=pltpu.CompilerParams(
            dimension_semantics=("parallel", "parallel", "arbitrary"),
            vmem_limit_bytes=32 * 1024 * 1024),
        cost_estimate=cost,
    )(x, lbl)

    # ----- tiny final reductions in plain JAX -----
    ce = jnp.sum(ce_part) / jnp.sum(cnt_part)

    # Lovasz-Softmax tail directly on the kernel layout (C, N*HW_pad).
    # Padded columns carry err=0 and label=ignore (fg=0) -> provably loss-neutral.
    lbl_cols = label.reshape(N, HW).astype(jnp.int32)
    if HW_pad != HW:
        lbl_cols = jnp.pad(lbl_cols, ((0, 0), (0, HW_pad - HW)),
                           constant_values=ignore_lb)
    lbl_cols = lbl_cols.reshape(-1)                                      # (P,)

    # TODO(synk): global per-class descending sort has no Pallas TPU equivalent; done in JAX.
    order = jnp.argsort(-err, axis=1)                                    # (C, P)
    e_sorted = jnp.take_along_axis(err, order, axis=1)
    fg_sorted = (lbl_cols[order] ==
                 jnp.arange(C, dtype=jnp.int32)[:, None]).astype(jnp.float32)

    gts = jnp.sum(fg_sorted, axis=1, keepdims=True)
    intersection = gts - jnp.cumsum(fg_sorted, axis=1)
    union = gts + jnp.cumsum(1.0 - fg_sorted, axis=1)
    jaccard = 1.0 - intersection / union
    grad = jnp.concatenate([jaccard[:, :1], jaccard[:, 1:] - jaccard[:, :-1]],
                           axis=1)
    lovasz = jnp.mean(jnp.sum(e_sorted * grad, axis=1))                  # mean over C

    return ce_weight * ce + lovasz_weight * lovasz


def lovasz_ce_loss_ref(logits, label, *, ce_weight=0.0, lovasz_weight=0.0,
                       ignore_lb=255):
    """Pure-JAX mirror of the PyTorch Lovasz_CE_loss forward."""
    N, C, H, W = logits.shape
    # CrossEntropyLoss(ignore_index=255, reduction='mean')
    valid = label != ignore_lb
    lbl = jnp.where(valid, label, 0)
    logp = jax.nn.log_softmax(logits.astype(jnp.float32), axis=1)
    oh = jax.nn.one_hot(lbl, C, axis=1, dtype=jnp.float32)
    nll = -jnp.sum(logp * oh, axis=1)
    ce = jnp.sum(jnp.where(valid, nll, 0.0)) / jnp.sum(valid).astype(jnp.float32)

    # LovaszSoftmax (the PyTorch module uses the raw inputs as probabilities).
    inputs_flat = logits.transpose(0, 2, 3, 1).reshape(-1, C).astype(jnp.float32)
    targets_flat = label.reshape(-1)
    losses = []
    for c in range(C):
        target_c = (targets_flat == c).astype(jnp.float32)
        input_c = inputs_flat[:, c]
        err = jnp.abs(target_c - input_c)
        order = jnp.argsort(-err)
        e_s = err[order]
        t_s = target_c[order]
        g = jnp.sum(t_s)
        intersection = g - jnp.cumsum(t_s)
        union = g + jnp.cumsum(1.0 - t_s)
        jac = 1.0 - intersection / union
        grad = jnp.concatenate([jac[:1], jac[1:] - jac[:-1]])
        losses.append(jnp.dot(e_s, grad))
    lovasz = jnp.mean(jnp.stack(losses))
    return ce_weight * ce + lovasz_weight * lovasz


if __name__ == "__main__":
    key = jax.random.PRNGKey(0)
    k_logits, k_label, k_ign = jax.random.split(key, 3)

    N, C, H, W = 2, 4, 16, 16
    logits = jax.random.normal(k_logits, (N, C, H, W), dtype=jnp.float32)
    label = jax.random.randint(k_label, (N, H, W), 0, C, dtype=jnp.int32)
    # mark ~10% of pixels as ignore (255)
    ign_mask = jax.random.uniform(k_ign, (N, H, W)) < 0.1
    label = jnp.where(ign_mask, 255, label)

    ce_w, lov_w = 0.4, 0.6   # nonzero weights so both branches are exercised
    out = lovasz_ce_loss_pallas(logits, label, ce_weight=ce_w, lovasz_weight=lov_w)
    out = jax.block_until_ready(out)

    ref = lovasz_ce_loss_ref(logits, label, ce_weight=ce_w, lovasz_weight=lov_w)
    assert jnp.allclose(out, ref, rtol=1e-5, atol=1e-6), (out, ref)

    print("KERNEL_OK")
</pallas_src>

<mosaic_0001>
module attributes {stable_mosaic.version = 11 : i64} {
  func.func @_ce_lovasz_kernel(%arg0: i32, %arg1: i32, %arg2: i32, %arg3: memref<1x4x256xf32, #tpu.memory_space<vmem>>, %arg4: memref<1x1x256xi32, #tpu.memory_space<vmem>>, %arg5: memref<4x256xf32, #tpu.memory_space<vmem>>, %arg6: memref<1x1x256xf32, #tpu.memory_space<vmem>>, %arg7: memref<1x1x256xf32, #tpu.memory_space<vmem>>) attributes {dimension_semantics = [#tpu.dimension_semantics<parallel>, #tpu.dimension_semantics<parallel>, #tpu.dimension_semantics<arbitrary>], iteration_bounds = array<i64: 2, 1, 1>, scalar_prefetch = 0 : i64, scratch_operands = 0 : i64, tpu.core_type = #tpu.core_type<tc>, window_params = [{transform_indices = @transform_0, window_bounds = array<i64: 1, 4, 256>}, {transform_indices = @transform_1, window_bounds = array<i64: 1, 1, 256>}, {transform_indices = @transform_2, window_bounds = array<i64: 4, 256>}, {transform_indices = @transform_3, window_bounds = array<i64: 1, 1, 256>}, {transform_indices = @transform_4, window_bounds = array<i64: 1, 1, 256>}]} {
    %c0_i32 = arith.constant 0 : i32
    %0 = arith.cmpi eq, %arg2, %c0_i32 : i32
    %1 = arith.extui %0 : i1 to i32
    %c0_i32_0 = arith.constant 0 : i32
    %2 = arith.cmpi ne, %1, %c0_i32_0 : i32
    scf.if %2 {
      %cst_26 = arith.constant 0.000000e+00 : f32
      %62 = vector.broadcast %cst_26 : f32 to vector<1x1x256xf32>
      %c0_27 = arith.constant 0 : index
      %c0_28 = arith.constant 0 : index
      %c0_29 = arith.constant 0 : index
      %63 = vector.load %arg6[%c0_27, %c0_28, %c0_29] : memref<1x1x256xf32, #tpu.memory_space<vmem>>, vector<1x1x256xf32>
      tpu.vector_store %arg6[%c0_27, %c0_28, %c0_29], %62 {strides = array<i32>} : memref<1x1x256xf32, #tpu.memory_space<vmem>>, vector<1x1x256xf32>,
      %cst_30 = arith.constant 0.000000e+00 : f32
      %64 = vector.broadcast %cst_30 : f32 to vector<1x1x256xf32>
      %c0_31 = arith.constant 0 : index
      %c0_32 = arith.constant 0 : index
      %c0_33 = arith.constant 0 : index
      %65 = vector.load %arg7[%c0_31, %c0_32, %c0_33] : memref<1x1x256xf32, #tpu.memory_space<vmem>>, vector<1x1x256xf32>
      tpu.vector_store %arg7[%c0_31, %c0_32, %c0_33], %64 {strides = array<i32>} : memref<1x1x256xf32, #tpu.memory_space<vmem>>, vector<1x1x256xf32>,
    } else {
    }
    %c0 = arith.constant 0 : index
    %c0_1 = arith.constant 0 : index
    %c0_2 = arith.constant 0 : index
    %3 = vector.load %arg3[%c0, %c0_1, %c0_2] : memref<1x4x256xf32, #tpu.memory_space<vmem>>, vector<1x4x256xf32>
    %4 = vector.shape_cast %3 : vector<1x4x256xf32> to vector<4x256xf32>
    %c0_3 = arith.constant 0 : index
    %c0_4 = arith.constant 0 : index
    %c0_5 = arith.constant 0 : index
    %5 = vector.load %arg4[%c0_3, %c0_4, %c0_5] : memref<1x1x256xi32, #tpu.memory_space<vmem>>, vector<1x1x256xi32>
    %6 = vector.shape_cast %5 : vector<1x1x256xi32> to vector<1x256xi32>
    %c1_i32 = arith.constant 1 : i32
    %7 = arith.muli %arg1, %c1_i32 : i32
    %8 = arith.addi %7, %arg2 : i32
    %c256_i32 = arith.constant 256 : i32
    %9 = arith.muli %8, %c256_i32 : i32
    %10 = tpu.iota {dimensions = array<i32: 1>} : vector<1x256xi32>
    %11 = vector.broadcast %9 : i32 to vector<1x256xi32>
    %12 = arith.addi %11, %10 : vector<1x256xi32>
    %c256_i32_6 = arith.constant 256 : i32
    %13 = vector.broadcast %c256_i32_6 : i32 to vector<1x256xi32>
    %14 = arith.cmpi slt, %12, %13 : vector<1x256xi32>
    %15 = tpu.iota {dimensions = array<i32: 0>} : vector<4x256xi32>
    %16 = vector.broadcast %6 : vector<1x256xi32> to vector<4x256xi32>
    %17 = arith.cmpi eq, %15, %16 : vector<4x256xi32>
    %18 = vector.broadcast %14 : vector<1x256xi1> to vector<4x256xi1>
    %19 = arith.andi %17, %18 : vector<4x256xi1>
    %cst = arith.constant 0.000000e+00 : f32
    %20 = vector.shape_cast %14 : vector<1x256xi1> to vector<1x256xi1>
    %21 = vector.broadcast %20 : vector<1x256xi1> to vector<4x256xi1>
    %22 = vector.broadcast %cst : f32 to vector<4x256xf32>
    %23 = arith.select %21, %4, %22 : vector<4x256xi1>, vector<4x256xf32>
    %24 = arith.extui %19 : vector<4x256xi1> to vector<4x256xi32>
    %25 = arith.sitofp %24 : vector<4x256xi32> to vector<4x256xf32>
    %26 = arith.subf %25, %23 : vector<4x256xf32>
    %27 = math.absf %26 : vector<4x256xf32>
    %c0_7 = arith.constant 0 : index
    %c0_8 = arith.constant 0 : index
    %28 = vector.load %arg5[%c0_7, %c0_8] : memref<4x256xf32, #tpu.memory_space<vmem>>, vector<4x256xf32>
    tpu.vector_store %arg5[%c0_7, %c0_8], %27 {strides = array<i32>} : memref<4x256xf32, #tpu.memory_space<vmem>>, vector<4x256xf32>,
    %c255_i32 = arith.constant 255 : i32
    %29 = vector.broadcast %c255_i32 : i32 to vector<1x256xi32>
    %30 = arith.cmpi ne, %6, %29 : vector<1x256xi32>
    %31 = arith.andi %30, %14 : vector<1x256xi1>
    %cst_9 = arith.constant dense<0xFF800000> : vector<256xf32>
    %32 = vector.multi_reduction <maximumf>, %23, %cst_9 [0] : vector<4x256xf32> to vector<256xf32>
    %33 = vector.shape_cast %32 : vector<256xf32> to vector<1x256xf32>
    %34 = vector.broadcast %33 : vector<1x256xf32> to vector<4x256xf32>
    %35 = arith.subf %23, %34 : vector<4x256xf32>
    %36 = math.exp %35 : vector<4x256xf32>
    %cst_10 = arith.constant dense<0.000000e+00> : vector<256xf32>
    %37 = vector.multi_reduction <add>, %36, %cst_10 [0] : vector<4x256xf32> to vector<256xf32>
    %38 = vector.shape_cast %37 : vector<256xf32> to vector<1x256xf32>
    %39 = math.log %38 : vector<1x256xf32>
    %40 = arith.addf %33, %39 : vector<1x256xf32>
    %cst_11 = arith.constant 0.000000e+00 : f32
    %41 = vector.broadcast %cst_11 : f32 to vector<4x256xf32>
    %42 = arith.select %19, %23, %41 : vector<4x256xi1>, vector<4x256xf32>
    %cst_12 = arith.constant dense<0.000000e+00> : vector<256xf32>
    %43 = vector.multi_reduction <add>, %42, %cst_12 [0] : vector<4x256xf32> to vector<256xf32>
    %44 = vector.shape_cast %43 : vector<256xf32> to vector<1x256xf32>
    %45 = arith.subf %40, %44 : vector<1x256xf32>
    %cst_13 = arith.constant 0.000000e+00 : f32
    %46 = vector.broadcast %cst_13 : f32 to vector<1x256xf32>
    %47 = arith.select %31, %45, %46 : vector<1x256xi1>, vector<1x256xf32>
    %c0_14 = arith.constant 0 : index
    %c0_15 = arith.constant 0 : index
    %c0_16 = arith.constant 0 : index
    %48 = vector.load %arg6[%c0_14, %c0_15, %c0_16] : memref<1x1x256xf32, #tpu.memory_space<vmem>>, vector<1x1x256xf32>
    %49 = vector.shape_cast %48 : vector<1x1x256xf32> to vector<1x256xf32>
    %50 = arith.addf %49, %47 : vector<1x256xf32>
    %c0_17 = arith.constant 0 : index
    %c0_18 = arith.constant 0 : index
    %c0_19 = arith.constant 0 : index
    %51 = vector.load %arg6[%c0_17, %c0_18, %c0_19] : memref<1x1x256xf32, #tpu.memory_space<vmem>>, vector<1x1x256xf32>
    %52 = vector.shape_cast %51 : vector<1x1x256xf32> to vector<1x256xf32>
    %53 = vector.shape_cast %50 : vector<1x256xf32> to vector<1x1x256xf32>
    tpu.vector_store %arg6[%c0_17, %c0_18, %c0_19], %53 {strides = array<i32>} : memref<1x1x256xf32, #tpu.memory_space<vmem>>, vector<1x1x256xf32>,
    %c0_20 = arith.constant 0 : index
    %c0_21 = arith.constant 0 : index
    %c0_22 = arith.constant 0 : index
    %54 = vector.load %arg7[%c0_20, %c0_21, %c0_22] : memref<1x1x256xf32, #tpu.memory_space<vmem>>, vector<1x1x256xf32>
    %55 = vector.shape_cast %54 : vector<1x1x256xf32> to vector<1x256xf32>
    %56 = arith.extui %31 : vector<1x256xi1> to vector<1x256xi32>
    %57 = arith.sitofp %56 : vector<1x256xi32> to vector<1x256xf32>
    %58 = arith.addf %55, %57 : vector<1x256xf32>
    %c0_23 = arith.constant 0 : index
    %c0_24 = arith.constant 0 : index
    %c0_25 = arith.constant 0 : index
    %59 = vector.load %arg7[%c0_23, %c0_24, %c0_25] : memref<1x1x256xf32, #tpu.memory_space<vmem>>, vector<1x1x256xf32>
    %60 = vector.shape_cast %59 : vector<1x1x256xf32> to vector<1x256xf32>
    %61 = vector.shape_cast %58 : vector<1x256xf32> to vector<1x1x256xf32>
    tpu.vector_store %arg7[%c0_23, %c0_24, %c0_25], %61 {strides = array<i32>} : memref<1x1x256xf32, #tpu.memory_space<vmem>>, vector<1x1x256xf32>,
    return
  }
  func.func @transform_0(%arg0: i32, %arg1: i32, %arg2: i32) -> (i32, i32, i32) {
    %c1_i32 = arith.constant 1 : i32
    %0 = arith.muli %arg1, %c1_i32 : i32
    %1 = arith.addi %0, %arg2 : i32
    %c0_i32 = arith.constant 0 : i32
    %c0_i32_0 = arith.constant 0 : i32
    return %arg0, %c0_i32, %1 : i32, i32, i32
  }
  func.func @transform_1(%arg0: i32, %arg1: i32, %arg2: i32) -> (i32, i32, i32) {
    %c1_i32 = arith.constant 1 : i32
    %0 = arith.muli %arg1, %c1_i32 : i32
    %1 = arith.addi %0, %arg2 : i32
    %c0_i32 = arith.constant 0 : i32
    %c0_i32_0 = arith.constant 0 : i32
    return %arg0, %c0_i32, %1 : i32, i32, i32
  }
  func.func @transform_2(%arg0: i32, %arg1: i32, %arg2: i32) -> (i32, i32) {
    %c1_i32 = arith.constant 1 : i32
    %0 = arith.muli %arg0, %c1_i32 : i32
    %c1_i32_0 = arith.constant 1 : i32
    %1 = arith.muli %arg1, %c1_i32_0 : i32
    %2 = arith.addi %0, %1 : i32
    %3 = arith.addi %2, %arg2 : i32
    %c0_i32 = arith.constant 0 : i32
    %c0_i32_1 = arith.constant 0 : i32
    return %c0_i32, %3 : i32, i32
  }
  func.func @transform_3(%arg0: i32, %arg1: i32, %arg2: i32) -> (i32, i32, i32) {
    %c1_i32 = arith.constant 1 : i32
    %0 = arith.muli %arg0, %c1_i32 : i32
    %1 = arith.addi %0, %arg1 : i32
    %c0_i32 = arith.constant 0 : i32
    %c0_i32_0 = arith.constant 0 : i32
    %c0_i32_1 = arith.constant 0 : i32
    return %1, %c0_i32, %c0_i32_0 : i32, i32, i32
  }
  func.func @transform_4(%arg0: i32, %arg1: i32, %arg2: i32) -> (i32, i32, i32) {
    %c1_i32 = arith.constant 1 : i32
    %0 = arith.muli %arg0, %c1_i32 : i32
    %1 = arith.addi %0, %arg1 : i32
    %c0_i32 = arith.constant 0 : i32
    %c0_i32_0 = arith.constant 0 : i32
    %c0_i32_1 = arith.constant 0 : i32
    return %1, %c0_i32, %c0_i32_0 : i32, i32, i32
  }
}

</mosaic_0001>

<llo_original>
// kernel: tpu_custom_call.1
$region0: #{tpu_custom_call.1}
  #allocation0 [shape = 'u32[]', space=smem, size = 0x4, offset = 0x4, fixed_abs, tag = 'smem constant byte address 0x4 - core index']
  #allocation1 [shape = 'u32[72,128]{1,0:T(1,128)}', space=vmem, size = 0x9000, scoped, tag = 'internal scratch']
  %s0 = inlined_call_operand.hbm [shape: f32[2,4,256], index: 0, kind: input, shape index: {}]
  %s1 = inlined_call_operand.hbm [shape: s32[2,1,256], index: 1, kind: input, shape index: {}]
  %s2 = inlined_call_operand.hbm [shape: f32[4,512], index: 2, kind: output, shape index: {0}]
  %s3 = inlined_call_operand.hbm [shape: f32[2,1,256], index: 3, kind: output, shape index: {1}]
  %s4 = inlined_call_operand.hbm [shape: f32[2,1,256], index: 4, kind: output, shape index: {2}]
  %5 = xla_tuple %s2, %s3, %s4
  %s6 = sld [smem:[#allocation0]]
  $region69: #{tpu_custom_call.1} parent=0
    _
  %s8 = ssub.s32 1, %s6
  %s9 = scalar_select 0, %s8, %s6
  $region1: #{tpu_custom_call.1} parent=0
    #allocation2 [shape = 'u8[8192]{0}', space=vmem, size = 0x2000, scoped, tag = 'input window, operand 0']
    #allocation3 [shape = 's32[2]{0}', space=sflag, size = 0x8, scoped, tag = 'scoped memory for tpu_custom_call.1']
    #allocation4 [shape = 's32[2]{0}', space=sflag, size = 0x8, scoped, tag = 'scoped memory for tpu_custom_call.1']
    #allocation5 [shape = 'u8[2048]{0}', space=vmem, size = 0x800, scoped, tag = 'input window, operand 1']
    #allocation6 [shape = 's32[2]{0}', space=sflag, size = 0x8, scoped, tag = 'scoped memory for tpu_custom_call.1']
    #allocation7 [shape = 'u8[8192]{0}', space=vmem, size = 0x2000, scoped, tag = 'output window, operand 0']
    #allocation8 [shape = 'u8[2048]{0}', space=vmem, size = 0x800, scoped, tag = 'output window, operand 1']
    #allocation9 [shape = 's32[2]{0}', space=sflag, size = 0x8, scoped, tag = 'scoped memory for tpu_custom_call.1']
    #allocation10 [shape = 'u8[2048]{0}', space=vmem, size = 0x800, scoped, tag = 'output window, operand 2']
    %10 = vsyncpa [#allocation3], 0
    %s11 = scalar_lea.sflag [#allocation3], 1
    %12 = vsyncpa %s11, 0
    %13 = vsyncpa [#allocation6], 0
    %s14 = scalar_lea.sflag [#allocation6], 1
    %15 = vsyncpa %s14, 0
    %16 = vsyncpa [#allocation4], 0
    %s17 = scalar_lea.sflag [#allocation4], 1
    %18 = vsyncpa %s17, 0
    %19 = vsyncpa [#allocation9], 0
    %s20 = scalar_lea.sflag [#allocation9], 1
    %21 = vsyncpa %s20, 0
    loop: start=0, step=1, limit=4
    $region2: #{tpu_custom_call.1} parent=1 // loop_pre_header
      _
    $region3: #{tpu_custom_call.1} parent=1 // loop_header
      %s23 = sphi 0, %s27
      %p24 = scmp.ge.s32.totalorder %s23, 4
      %s30 = sphi 0, %s49
      %s31 = sphi 0, %s45
      %s32 = sphi 0, %s41
      %s33 = sphi 0, %s30
      %s34 = sphi 0, %s31
      %s35 = sphi 0, %s32
      %s36 = sphi 0, %s33
      %s37 = sphi 0, %s34
      %s38 = sphi 0, %s35
      %s56 = sphi 0, %s58
      %s59 = sphi 0, %s56
      %s60 = sphi 0, %s59
      %s76 = sphi 0, %s60
      %s86 = sphi 0, %s88
      %s89 = sphi 0, %s86
      %s90 = sphi 0, %s89
      %s106 = sphi 0, %s90
      %s116 = sphi 0, %s118
      %s119 = sphi 0, %s116
      %s120 = sphi 0, %s119
      %s136 = sphi 0, %s120
      %s144 = sphi 0, %s146
      %s147 = sphi 0, %s144
      %s148 = sphi 0, %s147
      %s164 = sphi 0, %s148
      %s172 = sphi 0, %s174
      %s175 = sphi 0, %s172
      %s176 = sphi 0, %s175
      %s192 = sphi 0, %s176
    $region4: #{tpu_custom_call.1} parent=1 // loop_header_branch
      %26 = sbr.rel (%p24) target = $region8
    $region5: #{tpu_custom_call.1} parent=1 // loop_body
      %s28 = ssub.s32 %s23, 1
      %s29 = ssub.s32 %s23, 2
      %s39 = sadd.s32 1, %s32
      %p40 = scmp.ge.s32.totalorder %s39, 1
      %s41 = scalar_select %p40, 0, %s39
      %s42 = sadd.s32 1, %s31
      %s43 = scalar_select %p40, %s42, %s31
      %p44 = scmp.ge.s32.totalorder %s43, 1
      %s45 = scalar_select %p44, 0, %s43
      %s46 = sadd.s32 1, %s30
      %s47 = scalar_select %p44, %s46, %s30
      %p48 = scmp.ge.s32.totalorder %s47, 2
      %s49 = scalar_select %p48, 0, %s47
      %s50 = sadd.s32 %s31, %s32
      %s51 = sadd.s32 %s45, %s41
      %s52 = ssub.s32 %s30, %s49
      %s53 = ssub.s32 %s50, %s51
      %s54 = sor.u32 %s52, %s53
      %p55 = scmp.eq.s32.totalorder %s54, 0
      %s57 = sadd.s32 %s56, 1
      %s58 = scalar_select %p55, %s56, %s57
      %p61 = pneg %p55
      %p62 = scmp.eq.s32.totalorder %s23, 1
      %p63 = por %p61, %p62
      %p64 = scmp.ne.s32.totalorder %s56, %s59
      %p65 = scmp.eq.s32.totalorder %s23, 0
      %p66 = por %p64, %p65
      %p67 = scmp.ne.s32.totalorder %s56, %s59
      %p68 = scmp.eq.s32.totalorder %s28, 1
      %p69 = por %p67, %p68
      %p70 = scmp.ne.s32.totalorder %s59, %s60
      %p71 = scmp.eq.s32.totalorder %s28, 0
      %p72 = por %p70, %p71
      %p73 = scmp.ne.s32.totalorder %s59, %s60
      %p74 = scmp.eq.s32.totalorder %s29, 1
      %p75 = por %p73, %p74
      %p77 = scmp.ne.s32.totalorder %s60, %s76
      %p78 = scmp.eq.s32.totalorder %s29, 0
      %p79 = por %p77, %p78
      %s80 = sadd.s32 %s31, %s32
      %s81 = sadd.s32 %s45, %s41
      %s82 = ssub.s32 %s30, %s49
      %s83 = ssub.s32 %s80, %s81
      %s84 = sor.u32 %s82, %s83
      %p85 = scmp.eq.s32.totalorder %s84, 0
      %s87 = sadd.s32 %s86, 1
      %s88 = scalar_select %p85, %s86, %s87
      %p91 = pneg %p85
      %p92 = scmp.eq.s32.totalorder %s23, 1
      %p93 = por %p91, %p92
      %p94 = scmp.ne.s32.totalorder %s86, %s89
      %p95 = scmp.eq.s32.totalorder %s23, 0
      %p96 = por %p94, %p95
      %p97 = scmp.ne.s32.totalorder %s86, %s89
      %p98 = scmp.eq.s32.totalorder %s28, 1
      %p99 = por %p97, %p98
      %p100 = scmp.ne.s32.totalorder %s89, %s90
      %p101 = scmp.eq.s32.totalorder %s28, 0
      %p102 = por %p100, %p101
      %p103 = scmp.ne.s32.totalorder %s89, %s90
      %p104 = scmp.eq.s32.totalorder %s29, 1
      %p105 = por %p103, %p104
      %p107 = scmp.ne.s32.totalorder %s90, %s106
      %p108 = scmp.eq.s32.totalorder %s29, 0
      %p109 = por %p107, %p108
      %s110 = sadd.s32 %s30, %s31
      %s111 = sadd.s32 %s110, %s32
      %s112 = sadd.s32 %s49, %s45
      %s113 = sadd.s32 %s112, %s41
      %s114 = ssub.s32 %s111, %s113
      %p115 = scmp.eq.s32.totalorder %s114, 0
      %s117 = sadd.s32 %s116, 1
      %s118 = scalar_select %p115, %s116, %s117
      %p121 = pneg %p115
      %p122 = scmp.eq.s32.totalorder %s23, 1
      %p123 = por %p121, %p122
      %p124 = scmp.ne.s32.totalorder %s116, %s119
      %p125 = scmp.eq.s32.totalorder %s23, 0
      %p126 = por %p124, %p125
      %p127 = scmp.ne.s32.totalorder %s116, %s119
      %p128 = scmp.eq.s32.totalorder %s28, 1
      %p129 = por %p127, %p128
      %p130 = scmp.ne.s32.totalorder %s119, %s120
      %p131 = scmp.eq.s32.totalorder %s28, 0
      %p132 = por %p130, %p131
      %p133 = scmp.ne.s32.totalorder %s119, %s120
      %p134 = scmp.eq.s32.totalorder %s29, 1
      %p135 = por %p133, %p134
      %p137 = scmp.ne.s32.totalorder %s120, %s136
      %p138 = scmp.eq.s32.totalorder %s29, 0
      %p139 = por %p137, %p138
      %s140 = sadd.s32 %s30, %s31
      %s141 = sadd.s32 %s49, %s45
      %s142 = ssub.s32 %s140, %s141
      %p143 = scmp.eq.s32.totalorder %s142, 0
      %s145 = sadd.s32 %s144, 1
      %s146 = scalar_select %p143, %s144, %s145
      %p149 = pneg %p143
      %p150 = scmp.eq.s32.totalorder %s23, 1
      %p151 = por %p149, %p150
      %p152 = scmp.ne.s32.totalorder %s144, %s147
      %p153 = scmp.eq.s32.totalorder %s23, 0
      %p154 = por %p152, %p153
      %p155 = scmp.ne.s32.totalorder %s144, %s147
      %p156 = scmp.eq.s32.totalorder %s28, 1
      %p157 = por %p155, %p156
      %p158 = scmp.ne.s32.totalorder %s147, %s148
      %p159 = scmp.eq.s32.totalorder %s28, 0
      %p160 = por %p158, %p159
      %p161 = scmp.ne.s32.totalorder %s147, %s148
      %p162 = scmp.eq.s32.totalorder %s29, 1
      %p163 = por %p161, %p162
      %p165 = scmp.ne.s32.totalorder %s148, %s164
      %p166 = scmp.eq.s32.totalorder %s29, 0
      %p167 = por %p165, %p166
      %s168 = sadd.s32 %s30, %s31
      %s169 = sadd.s32 %s49, %s45
      %s170 = ssub.s32 %s168, %s169
      %p171 = scmp.eq.s32.totalorder %s170, 0
      %s173 = sadd.s32 %s172, 1
      %s174 = scalar_select %p171, %s172, %s173
      %p177 = pneg %p171
      %p178 = scmp.eq.s32.totalorder %s23, 1
      %p179 = por %p177, %p178
      %p180 = scmp.ne.s32.totalorder %s172, %s175
      %p181 = scmp.eq.s32.totalorder %s23, 0
      %p182 = por %p180, %p181
      %p183 = scmp.ne.s32.totalorder %s172, %s175
      %p184 = scmp.eq.s32.totalorder %s28, 1
      %p185 = por %p183, %p184
      %p186 = scmp.ne.s32.totalorder %s175, %s176
      %p187 = scmp.eq.s32.totalorder %s28, 0
      %p188 = por %p186, %p187
      %p189 = scmp.ne.s32.totalorder %s175, %s176
      %p190 = scmp.eq.s32.totalorder %s29, 1
      %p191 = por %p189, %p190
      %p193 = scmp.ne.s32.totalorder %s176, %s192
      %p194 = scmp.eq.s32.totalorder %s29, 0
      %p195 = por %p193, %p194
      %p196 = scmp.le.s32.totalorder 1, %s23
      %p197 = scmp.lt.s32.totalorder %s23, 3
      %p198 = pnand %p196, %p197
      %p199 = pneg %p198
      // Predicated region
      $region9: #{tpu_custom_call.1} parent=5 // pred_check
        _
      $region10: #{tpu_custom_call.1} parent=5 // pred_check_branch
        %201 = sbr.rel (%p198) target = $region12
      $region11: #{tpu_custom_call.1} parent=5 // pred_region
        %s202 = ssub.s32 %s23, 1
      $region12: #{tpu_custom_call.1} parent=5 // pred_fallthru
        _
      %p203 = scmp.lt.s32.totalorder %s23, 2
      // Predicated region
      $region13: #{tpu_custom_call.1} parent=5 // pred_check
        %p204 = pneg %p203
      $region14: #{tpu_custom_call.1} parent=5 // pred_check_branch
        %206 = sbr.rel (%p204) target = $region16
      $region15: #{tpu_custom_call.1} parent=5 // pred_region
        // Predicated region
        $region17: #{tpu_custom_call.1} parent=15 // pred_check
          %p207 = pneg %p66
        $region18: #{tpu_custom_call.1} parent=15 // pred_check_branch
          %209 = sbr.rel (%p207) target = $region20
        $region19: #{tpu_custom_call.1} parent=15 // pred_region
          %s210 = sand.u32 %s56, 1
          %s211 = scalar_lea.sflag [#allocation3], %s210
          %s212 = sand.u32 %s56, 1
          %s213 = smul.addr %s212, 8
          %s214 = scalar_lea.vmem [#allocation2], %s213
          %s215 = sadd.s32 %s31, %s32
          %s216 = smul.u32 2, %s215
          %218 = vsyncadd %s211, 0
          %s219 = smul.addr %s30, 2
          %s220 = sadd.s32 %s216, %s219
          %s221 = smul.addr %s220, 4
          %s222 = scalar_lea.hbm %s0, %s221
          %s224 = sshll.u32 %s222, 4
          %s225 = int_to_ptr.hbm [resolvable:$true] %s224
          %s226 = sshll.u32 %s214, 4
          %s227 = int_to_ptr.vmem [resolvable:$true] %s226
          %229 = dma.hbm_to_vmem [thread:$0]  %s225, 128, %s227, %s211
        $region20: #{tpu_custom_call.1} parent=15 // pred_fallthru
          _
        // Predicated region
        $region21: #{tpu_custom_call.1} parent=15 // pred_check
          %p230 = pneg %p96
        $region22: #{tpu_custom_call.1} parent=15 // pred_check_branch
          %232 = sbr.rel (%p230) target = $region24
        $region23: #{tpu_custom_call.1} parent=15 // pred_region
          %s233 = sand.u32 %s86, 1
          %s234 = scalar_lea.sflag [#allocation6], %s233
          %s235 = sand.u32 %s86, 1
          %s236 = smul.addr %s235, 2
          %s237 = scalar_lea.vmem [#allocation5], %s236
          %s238 = sadd.s32 %s31, %s32
          %s239 = smul.u32 2, %s238
          %241 = vsyncadd %s234, 0
          %s242 = smul.addr %s30, 2
          %s243 = sadd.s32 %s239, %s242
          %s244 = scalar_lea.hbm %s1, %s243
          %s246 = sshll.u32 %s244, 4
          %s247 = int_to_ptr.hbm [resolvable:$true] %s246
          %s248 = sshll.u32 %s237, 4
          %s249 = int_to_ptr.vmem [resolvable:$true] %s248
          %251 = dma.hbm_to_vmem [thread:$0]  %s247, 32, %s249, %s234
        $region24: #{tpu_custom_call.1} parent=15 // pred_fallthru
          _
      $region16: #{tpu_custom_call.1} parent=5 // pred_fallthru
        _
      %p252 = scmp.le.s32.totalorder 1, %s23
      %p253 = scmp.lt.s32.totalorder %s23, 3
      %p254 = pnand %p252, %p253
      %p255 = pneg %p254
      // Predicated region
      $region25: #{tpu_custom_call.1} parent=5 // pred_check
        _
      $region26: #{tpu_custom_call.1} parent=5 // pred_check_branch
        %257 = sbr.rel (%p254) target = $region28
      $region27: #{tpu_custom_call.1} parent=5 // pred_region
        %s258 = ssub.s32 %s23, 1
        %s259 = sand.u32 %s59, 1
        %s260 = scalar_lea.sflag [#allocation3], %s259
        %s261 = sand.u32 %s59, 1
        %s262 = smul.addr %s261, 8
        %s263 = scalar_lea.vmem [#allocation2], %s262
        // Predicated region
        $region29: #{tpu_custom_call.1} parent=27 // pred_check
          %p264 = pneg %p72
        $region30: #{tpu_custom_call.1} parent=27 // pred_check_branch
          %266 = sbr.rel (%p264) target = $region32
        $region31: #{tpu_custom_call.1} parent=27 // pred_region
          %268 = dma.done %s260, 128
        $region32: #{tpu_custom_call.1} parent=27 // pred_fallthru
          _
        %s269 = sand.u32 %s89, 1
        %s270 = scalar_lea.sflag [#allocation6], %s269
        %s271 = sand.u32 %s89, 1
        %s272 = smul.addr %s271, 2
        %s273 = scalar_lea.vmem [#allocation5], %s272
        // Predicated region
        $region33: #{tpu_custom_call.1} parent=27 // pred_check
          %p274 = pneg %p102
        $region34: #{tpu_custom_call.1} parent=27 // pred_check_branch
          %276 = sbr.rel (%p274) target = $region36
        $region35: #{tpu_custom_call.1} parent=27 // pred_region
          %278 = dma.done %s270, 32
        $region36: #{tpu_custom_call.1} parent=27 // pred_fallthru
          _
        %s279 = sand.u32 %s59, 1
        %s280 = scalar_lea.sflag [#allocation3], %s279
        %s281 = sand.u32 %s59, 1
        %s282 = smul.addr %s281, 8
        %s283 = scalar_lea.vmem [#allocation2], %s282
        %p284 = pneg %p72
        %p285 = pneg %p69
        %s286 = sand.u32 %s89, 1
        %s287 = scalar_lea.sflag [#allocation6], %s286
        %s288 = sand.u32 %s89, 1
        %s289 = smul.addr %s288, 2
        %s290 = scalar_lea.vmem [#allocation5], %s289
        %p291 = pneg %p102
        %p292 = pneg %p99
        %p293 = pneg %p132
        %p294 = pneg %p129
        %s295 = sand.u32 %s119, 1
        %s296 = scalar_lea.sflag [#allocation4], %s295
        %s297 = sand.u32 %s119, 1
        %s298 = smul.addr %s297, 8
        %s299 = scalar_lea.vmem [#allocation7], %s298
        %p300 = pneg %p160
        %p301 = pneg %p157
        %s302 = sand.u32 %s28, 1
        %s303 = scalar_lea.sflag [#allocation9], %s302
        %s304 = sand.u32 %s147, 1
        %s305 = smul.addr %s304, 2
        %s306 = scalar_lea.vmem [#allocation8], %s305
        %p307 = pneg %p188
        %p308 = pneg %p185
        %s309 = sand.u32 %s28, 1
        %s310 = scalar_lea.sflag [#allocation9], %s309
        %s311 = sand.u32 %s175, 1
        %s312 = smul.addr %s311, 2
        %s313 = scalar_lea.vmem [#allocation10], %s312
        %s314 = sadd.s32 %s34, %s35
        %s315 = smul.u32 2, %s314
        %s316 = sadd.s32 %s34, %s35
        %s317 = smul.u32 2, %s316
        %s318 = sadd.s32 %s33, %s34
        %s319 = sadd.s32 %s318, %s35
        %s320 = smul.u32 2, %s319
        %s321 = sadd.s32 %s33, %s34
        %s322 = sadd.s32 %s33, %s34
        %p323 = scmp.eq.s32.totalorder %s35, 0
        // Predicated region
        $region37: #{tpu_custom_call.1} parent=27 // pred_check
          %p324 = pneg %p323
        $region38: #{tpu_custom_call.1} parent=27 // pred_check_branch
          %326 = sbr.rel (%p324) target = $region40
        $region39: #{tpu_custom_call.1} parent=27 // pred_region
          %v327 = vlaneseq
          %vm328 = vcmp.ge.s32.totalorder %v327, 0
          %vm329 = vcmp.lt.s32.totalorder %v327, 256
          %vm330 = vmand %vm328, %vm329
          %331 = vst.msk [vmem:[%s306] sm:$0x3] %vm330, 0.0
          %332 = vst.msk [vmem:[%s313] sm:$0x3] %vm330, 0.0
        $region40: #{tpu_custom_call.1} parent=27 // pred_fallthru
          _
        %v333 = vld [vmem:[%s263] sm:$0xff]
        %v334 = vld [vmem:[%s273] sm:$0x3]
        %s335 = sadd.s32 %s34, %s35
        %s336 = smul.u32 %s335, 256
        %v337 = vlaneseq
        %v338 = vand.u32 %v337, 127
        %v339 = vadd.s32 %v338, 128
        %v340 = vstv %s336
        %v341 = vadd.s32 %v340, %v338
        %v342 = vadd.s32 %v340, %v339
        %vm343 = vcmp.lt.s32.totalorder %v341, 256
        %vm344 = vcmp.lt.s32.totalorder %v342, 256
        %v345 = vlaneseq
        %v346 = vshrl.u32 %v345, 7
        %v347 = vperm.slane %v334, 0
        %v348 = vperm.slane %v334, 1
        %vm349 = vcmp.eq.s32.totalorder %v346, %v347
        %vm350 = vcmp.eq.s32.totalorder %v346, %v348
        %v351 = vsel %vm343, 1, 0
        %v352 = vsel %vm344, 1, 0
        %vm353 = vcmp.eq.s32.totalorder %v351, 1
        %vm354 = vcmp.eq.s32.totalorder %v352, 1
        %vm355 = vmand %vm349, %vm353
        %vm356 = vmand %vm350, %vm354
        %358 = vst [vmem:[#allocation1] ss:$2 sm:$0xff] %v333
        %v359 = vld.sshfl [vmem:[#allocation1] sm:$0xff pattern:$0x75316420]
        %v360 = vld.sshfl [vmem:[#allocation1 + $0x8] sm:$0xff pattern:$0x75316420]
        %v363 = vsel %vm353, %v359, 0.0
        %v364 = vsel %vm354, %v360, 0.0
        %v365 = vsel %vm355, 1, 0
        %v366 = vsel %vm356, 1, 0
        %v367 = vcvt.s32.f32 %v365
        %v368 = vcvt.s32.f32 %v366
        %v369 = vsub.f32 %v367, %v363
        %v370 = vsub.f32 %v368, %v364
        %v371 = vand.u32 2147483647, %v369
        %v372 = vand.u32 2147483647, %v370
        %v375 = vrot.slane %v372, 4
        %vm376 = vcmask 1043456
        %v377 = vsel %vm376, %v371, %v375
        %379 = vst [vmem:[%s299] sm:$0xff] %v377
        %vm380 = vcmp.ne.s32.totalorder %v334, 255
        %v381 = vrot.slane %v352, 7
        %vm382 = vcmask 1040384
        %v383 = vsel %vm382, %v351, %v381
        %vm384 = vcmp.ne.s32.totalorder %v383, 0
        %vm385 = vmand %vm380, %vm384
        %v386 = vsel %vm376, %v363, -inf
        %v387 = vrot.slane %v386, 4
        %v388 = vmax.f32 %v386, %v387
        %v389 = vrot.slane %v388, 2
        %v390 = vmax.f32 %v388, %v389
        %v391 = vrot.slane %v390, 1
        %v392 = vmax.f32 %v390, %v391
        %v393 = vsel %vm376, %v364, -inf
        %v394 = vrot.slane %v393, 4
        %v395 = vmax.f32 %v393, %v394
        %v396 = vrot.slane %v395, 2
        %v397 = vmax.f32 %v395, %v396
        %v398 = vrot.slane %v397, 1
        %v399 = vmax.f32 %v397, %v398
        %v400 = vsub.f32 %v363, %v392
        %v401 = vsub.f32 %v364, %v399
        %v402 = vmul.f32 %v400, 1.442695
        %v403 = vpow.pop %v402
        %v404 = vmul.f32 %v401, 1.442695
        %v405 = vpow.pop %v404
        %v406 = vsel %vm376, %v403, 0.0
        %v407 = vrot.slane %v406, 4
        %v408 = vadd.f32 %v406, %v407
        %v409 = vrot.slane %v408, 2
        %v410 = vadd.f32 %v408, %v409
        %v411 = vrot.slane %v410, 1
        %v412 = vadd.f32 %v410, %v411
        %v413 = vsel %vm376, %v405, 0.0
        %v414 = vrot.slane %v413, 4
        %v415 = vadd.f32 %v413, %v414
        %v416 = vrot.slane %v415, 2
        %v417 = vadd.f32 %v415, %v416
        %v418 = vrot.slane %v417, 1
        %v419 = vadd.f32 %v417, %v418
        %v420 = vlog2.pop %v412
        %v421 = vmul.f32 %v420, 0.6931472
        %v422 = vlog2.pop %v419
        %v423 = vmul.f32 %v422, 0.6931472
        %v424 = vadd.f32 %v392, %v421
        %v425 = vadd.f32 %v399, %v423
        %v426 = vsel %vm355, %v363, 0.0
        %v427 = vsel %vm356, %v364, 0.0
        %v428 = vsel %vm376, %v426, 0.0
        %v429 = vrot.slane %v428, 4
        %v430 = vadd.f32 %v428, %v429
        %v431 = vrot.slane %v430, 2
        %v432 = vadd.f32 %v430, %v431
        %v433 = vrot.slane %v432, 1
        %v434 = vadd.f32 %v432, %v433
        %v435 = vsel %vm376, %v427, 0.0
        %v436 = vrot.slane %v435, 4
        %v437 = vadd.f32 %v435, %v436
        %v438 = vrot.slane %v437, 2
        %v439 = vadd.f32 %v437, %v438
        %v440 = vrot.slane %v439, 1
        %v441 = vadd.f32 %v439, %v440
        %v442 = vsub.f32 %v424, %v434
        %v443 = vsub.f32 %v425, %v441
        %v446 = vrot.slane %v443, 7
        %v447 = vsel %vm382, %v442, %v446
        %v449 = vsel %vm385, %v447, 0.0
        %v450 = vld [vmem:[%s306] sm:$0x3]
        %v451 = vadd.f32 %v450, %v449
        %v452 = vlaneseq
        %vm453 = vcmp.ge.s32.totalorder %v452, 0
        %vm454 = vcmp.lt.s32.totalorder %v452, 256
        %vm455 = vmand %vm453, %vm454
        %456 = vst.msk [vmem:[%s306] sm:$0x3] %vm455, %v451
        %v457 = vld [vmem:[%s313] sm:$0x3]
        %v458 = vsel %vm385, 1, 0
        %v459 = vcvt.s32.f32 %v458
        %v460 = vadd.f32 %v457, %v459
        %461 = vst.msk [vmem:[%s313] sm:$0x3] %vm455, %v460
        %s462 = sand.u32 %s119, 1
        %s463 = scalar_lea.sflag [#allocation4], %s462
        %s464 = sand.u32 %s119, 1
        %s465 = smul.addr %s464, 8
        %s466 = scalar_lea.vmem [#allocation7], %s465
        %s467 = sand.u32 %s28, 1
        %s468 = scalar_lea.sflag [#allocation9], %s467
        %s469 = sand.u32 %s147, 1
        %s470 = smul.addr %s469, 2
        %s471 = scalar_lea.vmem [#allocation8], %s470
        %s472 = sand.u32 %s28, 1
        %s473 = scalar_lea.sflag [#allocation9], %s472
        %s474 = sand.u32 %s175, 1
        %s475 = smul.addr %s474, 2
        %s476 = scalar_lea.vmem [#allocation10], %s475
        // Predicated region
        $region41: #{tpu_custom_call.1} parent=27 // pred_check
          %p477 = pneg %p129
        $region42: #{tpu_custom_call.1} parent=27 // pred_check_branch
          %479 = sbr.rel (%p477) target = $region44
        $region43: #{tpu_custom_call.1} parent=27 // pred_region
          %s480 = sadd.s32 %s33, %s34
          %s481 = sadd.s32 %s480, %s35
          %s482 = smul.u32 2, %s481
          %484 = vsyncadd %s463, 0
          %s485 = smul.addr %s482, 4
          %s486 = scalar_lea.hbm %s2, %s485
          %s488 = sshll.u32 %s466, 4
          %s489 = int_to_ptr.vmem [resolvable:$true] %s488
          %s490 = sshll.u32 %s486, 4
          %s491 = int_to_ptr.hbm [resolvable:$true] %s490
          %493 = dma.vmem_to_hbm [thread:$0]  %s489, 128, %s491, %s463
        $region44: #{tpu_custom_call.1} parent=27 // pred_fallthru
          _
        // Predicated region
        $region45: #{tpu_custom_call.1} parent=27 // pred_check
          %p494 = pneg %p157
        $region46: #{tpu_custom_call.1} parent=27 // pred_check_branch
          %496 = sbr.rel (%p494) target = $region48
        $region47: #{tpu_custom_call.1} parent=27 // pred_region
          %s497 = sadd.s32 %s33, %s34
          %499 = vsyncadd %s468, 0
          %s500 = smul.addr %s497, 2
          %s501 = scalar_lea.hbm %s3, %s500
          %s503 = sshll.u32 %s471, 4
          %s504 = int_to_ptr.vmem [resolvable:$true] %s503
          %s505 = sshll.u32 %s501, 4
          %s506 = int_to_ptr.hbm [resolvable:$true] %s505
          %508 = dma.vmem_to_hbm [thread:$0]  %s504, 32, %s506, %s468
        $region48: #{tpu_custom_call.1} parent=27 // pred_fallthru
          _
        // Predicated region
        $region49: #{tpu_custom_call.1} parent=27 // pred_check
          %p509 = pneg %p185
        $region50: #{tpu_custom_call.1} parent=27 // pred_check_branch
          %511 = sbr.rel (%p509) target = $region52
        $region51: #{tpu_custom_call.1} parent=27 // pred_region
          %s512 = sadd.s32 %s33, %s34
          %514 = vsyncadd %s473, 0
          %s515 = smul.addr %s512, 2
          %s516 = scalar_lea.hbm %s4, %s515
          %s518 = sshll.u32 %s476, 4
          %s519 = int_to_ptr.vmem [resolvable:$true] %s518
          %s520 = sshll.u32 %s516, 4
          %s521 = int_to_ptr.hbm [resolvable:$true] %s520
          %523 = dma.vmem_to_hbm [thread:$0]  %s519, 32, %s521, %s473
        $region52: #{tpu_custom_call.1} parent=27 // pred_fallthru
          _
      $region28: #{tpu_custom_call.1} parent=5 // pred_fallthru
        _
      %p524 = scmp.le.s32.totalorder 2, %s23
      // Predicated region
      $region53: #{tpu_custom_call.1} parent=5 // pred_check
        %p525 = pneg %p524
      $region54: #{tpu_custom_call.1} parent=5 // pred_check_branch
        %527 = sbr.rel (%p525) target = $region56
      $region55: #{tpu_custom_call.1} parent=5 // pred_region
        %s528 = ssub.s32 %s23, 2
        // Predicated region
        $region57: #{tpu_custom_call.1} parent=55 // pred_check
          %p529 = pneg %p135
        $region58: #{tpu_custom_call.1} parent=55 // pred_check_branch
          %531 = sbr.rel (%p529) target = $region60
        $region59: #{tpu_custom_call.1} parent=55 // pred_region
          %s532 = sand.u32 %s120, 1
          %s533 = scalar_lea.sflag [#allocation4], %s532
          %s534 = sand.u32 %s120, 1
          %s535 = smul.addr %s534, 8
          %s536 = scalar_lea.vmem [#allocation7], %s535
          %538 = dma.done %s533, 128
        $region60: #{tpu_custom_call.1} parent=55 // pred_fallthru
          _
        // Predicated region
        $region61: #{tpu_custom_call.1} parent=55 // pred_check
          %p539 = pneg %p163
        $region62: #{tpu_custom_call.1} parent=55 // pred_check_branch
          %541 = sbr.rel (%p539) target = $region64
        $region63: #{tpu_custom_call.1} parent=55 // pred_region
          %s542 = sand.u32 %s29, 1
          %s543 = scalar_lea.sflag [#allocation9], %s542
          %s544 = sand.u32 %s148, 1
          %s545 = smul.addr %s544, 2
          %s546 = scalar_lea.vmem [#allocation8], %s545
          %548 = dma.done %s543, 32
        $region64: #{tpu_custom_call.1} parent=55 // pred_fallthru
          _
        // Predicated region
        $region65: #{tpu_custom_call.1} parent=55 // pred_check
          %p549 = pneg %p191
        $region66: #{tpu_custom_call.1} parent=55 // pred_check_branch
          %551 = sbr.rel (%p549) target = $region68
        $region67: #{tpu_custom_call.1} parent=55 // pred_region
          %s552 = sand.u32 %s29, 1
          %s553 = scalar_lea.sflag [#allocation9], %s552
          %s554 = sand.u32 %s176, 1
          %s555 = smul.addr %s554, 2
          %s556 = scalar_lea.vmem [#allocation10], %s555
          %558 = dma.done %s553, 32
        $region68: #{tpu_custom_call.1} parent=55 // pred_fallthru
          _
      $region56: #{tpu_custom_call.1} parent=5 // pred_fallthru
        _
    $region6: #{tpu_custom_call.1} parent=1 // loop_footer
      %s27 = sadd.s32 1, %s23
    $region7: #{tpu_custom_call.1} parent=1 // loop_footer_branch
      %22 = sbr.rel target = $region3
    $region8: #{tpu_custom_call.1} parent=1 // loop_exit
      _
    %559 = vsyncpa [#allocation3], 1
    %s560 = scalar_lea.sflag [#allocation3], 1
    %561 = vsyncpa %s560, 1
    %562 = vsyncpa [#allocation6], 1
    %s563 = scalar_lea.sflag [#allocation6], 1
    %564 = vsyncpa %s563, 1
    %565 = vsyncpa [#allocation4], 1
    %s566 = scalar_lea.sflag [#allocation4], 1
    %567 = vsyncpa %s566, 1
    %568 = vsyncpa [#allocation9], 1
    %s569 = scalar_lea.sflag [#allocation9], 1
    %570 = vsyncpa %s569, 1

</llo_original>
